<compile_context>
chip_gen: v6e
topology: v6e:2x2x1
jax: 0.10.0
libtpu: 0.0.40
codegen_flags: <defaults>
</compile_context>

<pallas_src>
import functools
import math

import jax
import jax.numpy as jnp
from jax.experimental import pallas as pl
from jax.experimental.pallas import tpu as pltpu


# ----------------------------------------------------------------------------
# Buffer setup (equivalent of PositionalEncoding.__init__) -- used for the
# reference check and for the streaming fallback path.
# ----------------------------------------------------------------------------
def make_positional_encoding(d_model: int, max_len: int = 5000) -> jnp.ndarray:
    position = jnp.arange(0, max_len, dtype=jnp.float32)[:, None]            # (L, 1)
    div_term = jnp.exp(
        jnp.arange(0, d_model, 2, dtype=jnp.float32)
        * (-math.log(10000.0) / d_model)
    )                                                                         # (D/2,)
    angles = position * div_term                                              # (L, D/2)
    pe = jnp.zeros((max_len, d_model), dtype=jnp.float32)
    pe = pe.at[:, 0::2].set(jnp.sin(angles))
    pe = pe.at[:, 1::2].set(jnp.cos(angles))
    return pe


def _round_up(n: int, m: int) -> int:
    return ((n + m - 1) // m) * m


# ----------------------------------------------------------------------------
# Kernels
# ----------------------------------------------------------------------------
def _pe_fused_kernel(params_ref, x_ref, o_ref, *, block_rows: int):
    """out = x + pe(rows of this tile), pe computed in-kernel (no HBM pe stream).

    params_ref: (2, D) f32 constants, resident across the grid:
        row 0 = per-column inverse frequency  exp(-(2*floor(k/2)) * ln(1e4)/d_model)
        row 1 = per-column parity (1.0 for odd columns -> cos, even -> sin)
    """
    tm, d = x_ref.shape
    row0 = pl.program_id(0) * block_rows
    pos = (jax.lax.broadcasted_iota(jnp.int32, (tm, d), 0) + row0).astype(jnp.float32)

    params = params_ref[...]
    inv_freq = params[0:1, :]        # (1, D), broadcasts over the tile rows
    is_odd = params[1:2, :] > 0.5    # (1, D)

    angle = pos * inv_freq                                   # (TM, D)
    pe = jnp.where(is_odd, jnp.cos(angle), jnp.sin(angle))   # even: sin, odd: cos
    o_ref[...] = x_ref[...] + pe.astype(x_ref.dtype)


def _pe_stream_kernel(x_ref, pe_ref, o_ref):
    """Fallback: out = x + pe tile streamed from HBM (still tiled / pipelined)."""
    o_ref[...] = x_ref[...] + pe_ref[...].astype(x_ref.dtype)


# ----------------------------------------------------------------------------
# pallas_call wrappers
# ----------------------------------------------------------------------------
def _tile_rows(seq_len: int, block_rows: int) -> int:
    # (8,128) rule: second-to-last block dim must be a multiple of 8 OR equal the
    # full array extent.  block_rows is a multiple of 8; otherwise use full extent.
    return seq_len if seq_len <= block_rows else block_rows


def _forward_fused(x_pad: jnp.ndarray, pe_params: jnp.ndarray, block_rows: int):
    seq_len, d_pad = x_pad.shape
    tm = _tile_rows(seq_len, block_rows)
    grid = (pl.cdiv(seq_len, tm),)
    return pl.pallas_call(
        functools.partial(_pe_fused_kernel, block_rows=tm),
        out_shape=jax.ShapeDtypeStruct((seq_len, d_pad), x_pad.dtype),
        grid=grid,
        in_specs=[
            pl.BlockSpec((2, d_pad), lambda i: (0, 0)),    # tiny constants, resident
            pl.BlockSpec((tm, d_pad), lambda i: (i, 0)),   # x tile
        ],
        out_specs=pl.BlockSpec((tm, d_pad), lambda i: (i, 0)),
        compiler_params=pltpu.CompilerParams(
            # Megacore split of the seq-axis grid on v7x; no-op on v5e/v6e.
            dimension_semantics=("parallel",),
        ),
        # NOTE: in production (under jit with donated activations) add
        # input_output_aliases={1: 0} so `out` reuses x's HBM buffer.  Omitted
        # here so the demo can keep reading `x` after the call.
    )(pe_params, x_pad)


def _forward_stream(x_pad: jnp.ndarray, pe_table_pad: jnp.ndarray, block_rows: int):
    seq_len, d_pad = x_pad.shape
    tm = _tile_rows(seq_len, block_rows)
    if tm % 8 != 0:
        # Rare case (short seq not a multiple of 8): the pe block must then equal
        # the pe array's full row extent, so clamp the table to seq_len rows.
        pe_table_pad = pe_table_pad[:seq_len]
    grid = (pl.cdiv(seq_len, tm),)
    return pl.pallas_call(
        _pe_stream_kernel,
        out_shape=jax.ShapeDtypeStruct((seq_len, d_pad), x_pad.dtype),
        grid=grid,
        in_specs=[
            pl.BlockSpec((tm, d_pad), lambda i: (i, 0)),   # x tile
            # Full pe table passed; the BlockSpec index_map picks the rows this
            # tile needs -- no host-side pe[:seq_len] slice copy.
            pl.BlockSpec((tm, d_pad), lambda i: (i, 0)),
        ],
        out_specs=pl.BlockSpec((tm, d_pad), lambda i: (i, 0)),
        compiler_params=pltpu.CompilerParams(
            dimension_semantics=("parallel",),
        ),
    )(x_pad, pe_table_pad)


# ----------------------------------------------------------------------------
# Module-like wrapper (mirrors the PyTorch nn.Module)
# ----------------------------------------------------------------------------
class PositionalEncoding:
    def __init__(self, d_model: int, max_len: int = 5000, block_rows: int = 512):
        assert d_model % 2 == 0, "d_model must be even (as the PyTorch reference requires)"
        assert block_rows % 8 == 0
        self.d_model = d_model
        self.max_len = max_len
        self.block_rows = block_rows
        # Lane-dense feature width (multiple of 128); no-op for typical d_model.
        self.d_pad = _round_up(d_model, 128)

        # Tiny per-column constants for the fused kernel (identical angle values
        # to the PyTorch table construction).
        k = jnp.arange(d_model)
        even = (2 * (k // 2)).astype(jnp.float32)                 # 0,0,2,2,4,4,...
        inv_freq = jnp.exp(even * (-math.log(10000.0) / d_model))
        parity = (k % 2).astype(jnp.float32)
        params = jnp.stack([inv_freq, parity], axis=0)            # (2, d_model)
        self.pe_params = jnp.pad(params, ((0, 0), (0, self.d_pad - d_model)))

        self._use_fused = True       # flipped off if in-kernel sin/cos fails to lower
        self._pe_table_pad = None    # lazily built fallback table

    def __call__(self, x: jnp.ndarray) -> jnp.ndarray:
        assert x.ndim == 2 and x.shape[1] == self.d_model
        seq_len = x.shape[0]
        assert seq_len <= self.max_len

        x_pad = x
        if self.d_pad != self.d_model:
            x_pad = jnp.pad(x, ((0, 0), (0, self.d_pad - self.d_model)))

        out_pad = None
        if self._use_fused:
            try:
                out_pad = _forward_fused(x_pad, self.pe_params, self.block_rows)
            except Exception:
                # TODO(synk): drop this fallback once in-kernel sin/cos lowering
                # is confirmed on every target TPU generation.
                self._use_fused = False
        if out_pad is None:
            if self._pe_table_pad is None:
                pe = make_positional_encoding(self.d_model, self.max_len)
                self._pe_table_pad = jnp.pad(
                    pe, ((0, 0), (0, self.d_pad - self.d_model)))
            out_pad = _forward_stream(x_pad, self._pe_table_pad, self.block_rows)

        if self.d_pad != self.d_model:
            out_pad = out_pad[:, : self.d_model]
        return out_pad


# ----------------------------------------------------------------------------
# Demo / self-test
# ----------------------------------------------------------------------------
if __name__ == "__main__":
    k1, k2 = jax.random.split(jax.random.PRNGKey(0))

    # --- Config 1: small shapes matching the module (seq=8, hidden=32) -------
    d_model, max_len, seq_len = 32, 64, 8
    x = jax.random.normal(k1, (seq_len, d_model), dtype=jnp.float32)
    mod = PositionalEncoding(d_model, max_len)
    out = jax.block_until_ready(mod(x))

    ref = x + make_positional_encoding(d_model, max_len)[:seq_len, :]
    assert out.shape == x.shape and out.dtype == x.dtype
    assert jnp.allclose(out, ref, atol=1e-4, rtol=1e-4), "mismatch vs reference (small)"

    # --- Config 2: exercises the seq-axis grid, pipelining and a partial tile -
    d_model2, max_len2, seq_len2 = 256, 512, 200          # 200 = 3*64 + 8 -> partial tile
    x2 = jax.random.normal(k2, (seq_len2, d_model2), dtype=jnp.float32)
    mod2 = PositionalEncoding(d_model2, max_len2, block_rows=64)
    out2 = jax.block_until_ready(mod2(x2))

    ref2 = x2 + make_positional_encoding(d_model2, max_len2)[:seq_len2, :]
    assert jnp.allclose(out2, ref2, atol=1e-4, rtol=1e-4), "mismatch vs reference (tiled)"

    print("KERNEL_OK")
</pallas_src>

<mosaic_0001>
module attributes {stable_mosaic.version = 11 : i64} {
  func.func @_pe_fused_kernel(%arg0: i32, %arg1: memref<2x128xf32, #tpu.memory_space<vmem>>, %arg2: memref<8x128xf32, #tpu.memory_space<vmem>>, %arg3: memref<8x128xf32, #tpu.memory_space<vmem>>) attributes {dimension_semantics = [#tpu.dimension_semantics<parallel>], iteration_bounds = array<i64: 1>, scalar_prefetch = 0 : i64, scratch_operands = 0 : i64, tpu.core_type = #tpu.core_type<tc>, window_params = [{pipeline_mode = #tpu.pipeline_mode<synchronous>, transform_indices = @transform_0, window_bounds = array<i64: 2, 128>}, {transform_indices = @transform_1, window_bounds = array<i64: 8, 128>}, {transform_indices = @transform_2, window_bounds = array<i64: 8, 128>}]} {
    %c8_i32 = arith.constant 8 : i32
    %0 = arith.muli %arg0, %c8_i32 : i32
    %1 = tpu.iota {dimensions = array<i32: 0>} : vector<8x128xi32>
    %2 = vector.broadcast %0 : i32 to vector<8x128xi32>
    %3 = arith.addi %1, %2 : vector<8x128xi32>
    %4 = arith.sitofp %3 : vector<8x128xi32> to vector<8x128xf32>
    %c0 = arith.constant 0 : index
    %c0_0 = arith.constant 0 : index
    %5 = vector.load %arg1[%c0, %c0_0] : memref<2x128xf32, #tpu.memory_space<vmem>>, vector<2x128xf32>
    %6 = vector.extract_strided_slice %5 {offsets = [0, 0], sizes = [1, 128], strides = [1, 1]} : vector<2x128xf32> to vector<1x128xf32>
    %7 = vector.extract_strided_slice %5 {offsets = [1, 0], sizes = [1, 128], strides = [1, 1]} : vector<2x128xf32> to vector<1x128xf32>
    %cst = arith.constant 5.000000e-01 : f32
    %8 = vector.broadcast %cst : f32 to vector<1x128xf32>
    %9 = arith.cmpf ogt, %7, %8 : vector<1x128xf32>
    %10 = vector.broadcast %6 : vector<1x128xf32> to vector<8x128xf32>
    %11 = arith.mulf %4, %10 : vector<8x128xf32>
    %12 = math.cos %11 : vector<8x128xf32>
    %13 = math.sin %11 : vector<8x128xf32>
    %14 = vector.shape_cast %9 : vector<1x128xi1> to vector<1x128xi1>
    %15 = vector.broadcast %14 : vector<1x128xi1> to vector<8x128xi1>
    %16 = arith.select %15, %12, %13 : vector<8x128xi1>, vector<8x128xf32>
    %c0_1 = arith.constant 0 : index
    %c0_2 = arith.constant 0 : index
    %17 = vector.load %arg2[%c0_1, %c0_2] : memref<8x128xf32, #tpu.memory_space<vmem>>, vector<8x128xf32>
    %18 = arith.addf %17, %16 : vector<8x128xf32>
    %c0_3 = arith.constant 0 : index
    %c0_4 = arith.constant 0 : index
    %19 = vector.load %arg3[%c0_3, %c0_4] : memref<8x128xf32, #tpu.memory_space<vmem>>, vector<8x128xf32>
    tpu.vector_store %arg3[%c0_3, %c0_4], %18 {strides = array<i32>} : memref<8x128xf32, #tpu.memory_space<vmem>>, vector<8x128xf32>,
    return
  }
  func.func @transform_0(%arg0: i32) -> (i32, i32) {
    %c0_i32 = arith.constant 0 : i32
    %c0_i32_0 = arith.constant 0 : i32
    %c0_i32_1 = arith.constant 0 : i32
    return %c0_i32, %c0_i32_0 : i32, i32
  }
  func.func @transform_1(%arg0: i32) -> (i32, i32) {
    %c0_i32 = arith.constant 0 : i32
    %c0_i32_0 = arith.constant 0 : i32
    return %arg0, %c0_i32 : i32, i32
  }
  func.func @transform_2(%arg0: i32) -> (i32, i32) {
    %c0_i32 = arith.constant 0 : i32
    %c0_i32_0 = arith.constant 0 : i32
    return %arg0, %c0_i32 : i32, i32
  }
}

module attributes {stable_mosaic.version = 11 : i64} {
  func.func @_pe_stream_kernel(%arg0: i32, %arg1: memref<8x128xf32, #tpu.memory_space<vmem>>, %arg2: memref<8x128xf32, #tpu.memory_space<vmem>>, %arg3: memref<8x128xf32, #tpu.memory_space<vmem>>) attributes {dimension_semantics = [#tpu.dimension_semantics<parallel>], iteration_bounds = array<i64: 1>, scalar_prefetch = 0 : i64, scratch_operands = 0 : i64, tpu.core_type = #tpu.core_type<tc>, window_params = [{transform_indices = @transform_0, window_bounds = array<i64: 8, 128>}, {transform_indices = @transform_1, window_bounds = array<i64: 8, 128>}, {transform_indices = @transform_2, window_bounds = array<i64: 8, 128>}]} {
    %c0 = arith.constant 0 : index
    %c0_0 = arith.constant 0 : index
    %0 = vector.load %arg1[%c0, %c0_0] : memref<8x128xf32, #tpu.memory_space<vmem>>, vector<8x128xf32>
    %c0_1 = arith.constant 0 : index
    %c0_2 = arith.constant 0 : index
    %1 = vector.load %arg2[%c0_1, %c0_2] : memref<8x128xf32, #tpu.memory_space<vmem>>, vector<8x128xf32>
    %2 = arith.addf %0, %1 : vector<8x128xf32>
    %c0_3 = arith.constant 0 : index
    %c0_4 = arith.constant 0 : index
    %3 = vector.load %arg3[%c0_3, %c0_4] : memref<8x128xf32, #tpu.memory_space<vmem>>, vector<8x128xf32>
    tpu.vector_store %arg3[%c0_3, %c0_4], %2 {strides = array<i32>} : memref<8x128xf32, #tpu.memory_space<vmem>>, vector<8x128xf32>,
    return
  }
  func.func @transform_0(%arg0: i32) -> (i32, i32) {
    %c0_i32 = arith.constant 0 : i32
    %c0_i32_0 = arith.constant 0 : i32
    return %arg0, %c0_i32 : i32, i32
  }
  func.func @transform_1(%arg0: i32) -> (i32, i32) {
    %c0_i32 = arith.constant 0 : i32
    %c0_i32_0 = arith.constant 0 : i32
    return %arg0, %c0_i32 : i32, i32
  }
  func.func @transform_2(%arg0: i32) -> (i32, i32) {
    %c0_i32 = arith.constant 0 : i32
    %c0_i32_0 = arith.constant 0 : i32
    return %arg0, %c0_i32 : i32, i32
  }
}

</mosaic_0001>

<llo_original>
// kernel: tpu_custom_call.1
$region0: #{tpu_custom_call.1}
  #allocation0 [shape = 'u32[]', space=smem, size = 0x4, offset = 0x4, fixed_abs, tag = 'smem constant byte address 0x4 - core index']
  #allocation1 [shape = 'u32[144,128]{1,0:T(1,128)}', space=vmem, size = 0x12000, scoped, tag = 'internal scratch']
  %s0 = inlined_call_operand.hbm [shape: f32[2,128], index: 0, kind: input, shape index: {}]
  %s1 = inlined_call_operand.hbm [shape: f32[8,128], index: 1, kind: input, shape index: {}]
  %s2 = inlined_call_operand.hbm [shape: f32[8,128], index: 2, kind: output, shape index: {}]
  %s3 = sld [smem:[#allocation0]]
  $region26: #{tpu_custom_call.1} parent=0
    _
  %s5 = ssub.s32 1, %s3
  %s6 = scalar_select 0, %s5, %s3
  $region1: #{tpu_custom_call.1} parent=0
    #allocation2 [shape = 'u8[1024]{0}', space=vmem, size = 0x400, scoped, tag = 'input window, operand 0, single buffered']
    #allocation3 [shape = 's32[1]{0}', space=sflag, size = 0x4, scoped, tag = 'scoped memory for tpu_custom_call.1']
    #allocation4 [shape = 's32[1]{0}', space=sflag, size = 0x4, scoped, tag = 'scoped memory for tpu_custom_call.1']
    #allocation5 [shape = 'u8[4096]{0}', space=vmem, size = 0x1000, scoped, tag = 'input window, operand 1, single buffered']
    #allocation6 [shape = 's32[1]{0}', space=sflag, size = 0x4, scoped, tag = 'scoped memory for tpu_custom_call.1']
    #allocation7 [shape = 'u8[4096]{0}', space=vmem, size = 0x1000, scoped, tag = 'output window, operand 0, single buffered']
    %7 = vsyncpa [#allocation3], 0
    %8 = vsyncpa [#allocation6], 0
    %9 = vsyncpa [#allocation4], 0
    // Predicated region
    $region2: #{tpu_custom_call.1} parent=1 // pred_check
      _
    $region3: #{tpu_custom_call.1} parent=1 // pred_check_branch
      %11 = sbr.rel (0) target = $region5
    $region4: #{tpu_custom_call.1} parent=1 // pred_region
      %s13 = ssub.s32 32, 32
      %14 = vsyncadd [#allocation3], %s13
      %s16 = sshll.u32 [#allocation2], 4
      %s17 = int_to_ptr.vmem [resolvable:$true] %s16
      %19 = dma.hbm_to_vmem [thread:$0]  %s0, 32, %s17, [#allocation3]
    $region5: #{tpu_custom_call.1} parent=1 // pred_fallthru
      _
    // Predicated region
    $region6: #{tpu_custom_call.1} parent=1 // pred_check
      _
    $region7: #{tpu_custom_call.1} parent=1 // pred_check_branch
      %21 = sbr.rel (0) target = $region9
    $region8: #{tpu_custom_call.1} parent=1 // pred_region
      %s23 = ssub.s32 128, 128
      %24 = vsyncadd [#allocation6], %s23
      %s26 = sshll.u32 [#allocation5], 4
      %s27 = int_to_ptr.vmem [resolvable:$true] %s26
      %29 = dma.hbm_to_vmem [thread:$0]  %s1, 128, %s27, [#allocation6]
    $region9: #{tpu_custom_call.1} parent=1 // pred_fallthru
      _
    // Predicated region
    $region10: #{tpu_custom_call.1} parent=1 // pred_check
      _
    $region11: #{tpu_custom_call.1} parent=1 // pred_check_branch
      %31 = sbr.rel (0) target = $region13
    $region12: #{tpu_custom_call.1} parent=1 // pred_region
      %32 = dma.done [#allocation3], 32
    $region13: #{tpu_custom_call.1} parent=1 // pred_fallthru
      _
    // Predicated region
    $region14: #{tpu_custom_call.1} parent=1 // pred_check
      _
    $region15: #{tpu_custom_call.1} parent=1 // pred_check_branch
      %34 = sbr.rel (0) target = $region17
    $region16: #{tpu_custom_call.1} parent=1 // pred_region
      %35 = dma.done [#allocation6], 128
    $region17: #{tpu_custom_call.1} parent=1 // pred_fallthru
      _
    %s36 = smul.u32 0, 8
    %v37 = vlaneseq
    %v38 = vshrl.u32 %v37, 7
    %v39 = vstv %s36
    %v40 = vadd.s32 %v38, %v39
    %v41 = vcvt.s32.f32 %v40
    %v42 = vld [vmem:[#allocation2] sm:$0x3]
    %vm43 = vcmp.gt.f32.partialorder %v42, 0.5
    %v44 = vlaneseq
    %v45 = vshrl.u32 %v44, 7
    %v46 = vsub.s32 0, %v45
    %v47 = vrot.slane %v42, %v46
    %v48 = vmul.f32 %v41, %v47
    %v49 = vand.u32 2147483647, %v48
    %vm50 = vcmp.le.f32.partialorder %v49, 0.7853982
    %vm51 = vcmp.lt.s32.totalorder %v48, 0
    %v52 = vand.u32 %v48, 2139095040
    %v53 = vshrl.u32 %v52, 23
    %v54 = vsub.s32 %v53, 127
    %v55 = vand.u32 2147483647, %v48
    %v56 = vand.u32 %v55, 8388607
    %v57 = vor.u32 %v56, 8388608
    %v58 = vsub.s32 0, %v57
    %v59 = vadd.s32 %v54, 1
    %vm60 = vcmp.gt.s32.totalorder %v59, 0
    %v61 = vsel %vm60, %v59, 0
    %v62 = vshrl.u32 %v61, 5
    %v63 = vand.u32 %v61, 31
    %v64 = vsub.s32 32, %v63
    %v65 = vshrl.u32 683565275, %v64
    %v66 = vshll.u32 683565275, %v63
    %v67 = vshrl.u32 2475754826, %v64
    %v68 = vor.u32 %v66, %v67
    %v69 = vshll.u32 2475754826, %v63
    %v70 = vshrl.u32 2131351028, %v64
    %v71 = vor.u32 %v69, %v70
    %v72 = vshll.u32 2131351028, %v63
    %v73 = vshrl.u32 2102212464, %v64
    %v74 = vor.u32 %v72, %v73
    %v75 = vshll.u32 2102212464, %v63
    %v76 = vshrl.u32 920167782, %v64
    %v77 = vor.u32 %v75, %v76
    %v78 = vshll.u32 920167782, %v63
    %v79 = vshrl.u32 1326507024, %v64
    %v80 = vor.u32 %v78, %v79
    %vm81 = vcmp.lt.s32.totalorder %v62, 1
    %vm82 = vcmp.lt.s32.totalorder %v62, 2
    %vm83 = vcmp.lt.s32.totalorder %v62, 3
    %vm84 = vcmp.lt.s32.totalorder %v62, 4
    %v85 = vsel %vm81, %v65, %v68
    %v86 = vsel %vm84, %v74, 2102212464
    %v87 = vsel %vm83, %v71, %v86
    %v88 = vsel %vm82, %v85, %v87
    %v89 = vsel %vm81, %v68, %v71
    %v90 = vsel %vm84, %v77, 920167782
    %v91 = vsel %vm83, %v74, %v90
    %v92 = vsel %vm82, %v89, %v91
    %v93 = vsel %vm81, %v71, %v74
    %v94 = vsel %vm84, %v80, 1326507024
    %v95 = vsel %vm83, %v77, %v94
    %v96 = vsel %vm82, %v93, %v95
    %v97 = vshll.u32 %v57, 8
    %v98 = vmul.u32.u64.compose %v97, %v96
    %v99 = vextract.low.u32 %v98
    %v100 = vextract.high.u32 %v98
    %v101 = vmul.u32.u64.compose %v97, %v92
    %v102 = vextract.low.u32 %v101
    %v103 = vextract.high.u32 %v101
    %v104 = vmul.u32 %v97, %v88
    %v105 = vadd.s32 %v100, %v102
    %vm106 = vc.u32 %v100, %v102
    %v107 = vadd.s32 %v103, 1
    %v108 = vsel %vm106, %v107, %v103
    %v109 = vadd.s32 %v104, %v108
    %v110 = vadd.s32 %v109, 536870912
    %v111 = vshrl.u32 %v110, 30
    %v112 = vshll.u32 %v111, 30
    %v113 = vsub.s32 %v109, %v112
    %vm114 = vcmp.lt.s32.totalorder %v113, 0
    %v115 = vsub.s32 0, %v113
    %v116 = vsel %vm114, %v115, %v113
    %v117 = vclz %v116
    %v118 = vsub.s32 %v117, 2
    %vm119 = vcmp.gt.s32.totalorder 0, %v118
    %v120 = vsel %vm119, 0, %v118
    %v121 = vsub.s32 32, %v120
    %v122 = vshll.u32 %v113, %v120
    %v123 = vshrl.u32 %v105, %v121
    %v124 = vor.u32 %v122, %v123
    %v125 = vsub.s32 4294967266, %v120
    %v126 = vadd.s32 %v125, 127
    %v127 = vshll.u32 %v126, 23
    %v128 = vor.u32 4788187, %v127
    %v129 = vand.u32 2147483647, %v128
    %v131 = vcvt.s32.f32 %v124
    %v132 = vmul.f32 %v131, %v129
    %v133 = vxor.u32 %v132, 2147483648
    %v134 = vsel %vm51, %v133, %v132
    %v135 = vsub.s32 4, %v111
    %v136 = vsel %vm51, %v135, %v111
    %v137 = vsel %vm50, %v48, %v134
    %v138 = vsel %vm50, 0, %v136
    %v139 = vcosq.f32.pop %v137
    %v140 = vsinq.f32.pop %v137
    %vm141 = vweird.f32 %v48
    %v142 = vand.u32 %v138, 3
    %vm143 = vcmp.lt.s32.totalorder %v142, 2
    %vm144 = vcmp.eq.s32.totalorder %v142, 0
    %v145 = vxor.u32 %v140, 2147483648
    %v146 = vsel %vm144, %v139, %v145
    %vm147 = vcmp.eq.s32.totalorder %v142, 2
    %v148 = vxor.u32 %v139, 2147483648
    %v149 = vsel %vm147, %v148, %v140
    %v150 = vsel %vm143, %v146, %v149
    %v151 = vsel %vm141, nan, %v150
    %v152 = vand.u32 2147483647, %v48
    %vm153 = vcmp.le.f32.partialorder %v152, 0.7853982
    %vm154 = vcmp.lt.s32.totalorder %v48, 0
    %v155 = vand.u32 %v48, 2139095040
    %v156 = vshrl.u32 %v155, 23
    %v157 = vsub.s32 %v156, 127
    %v158 = vand.u32 2147483647, %v48
    %v159 = vand.u32 %v158, 8388607
    %v160 = vor.u32 %v159, 8388608
    %v161 = vsub.s32 0, %v160
    %v162 = vadd.s32 %v157, 1
    %vm163 = vcmp.gt.s32.totalorder %v162, 0
    %v164 = vsel %vm163, %v162, 0
    %v165 = vshrl.u32 %v164, 5
    %v166 = vand.u32 %v164, 31
    %v167 = vsub.s32 32, %v166
    %v168 = vshrl.u32 683565275, %v167
    %v169 = vshll.u32 683565275, %v166
    %v170 = vshrl.u32 2475754826, %v167
    %v171 = vor.u32 %v169, %v170
    %v172 = vshll.u32 2475754826, %v166
    %v173 = vshrl.u32 2131351028, %v167
    %v174 = vor.u32 %v172, %v173
    %v175 = vshll.u32 2131351028, %v166
    %v176 = vshrl.u32 2102212464, %v167
    %v177 = vor.u32 %v175, %v176
    %v178 = vshll.u32 2102212464, %v166
    %v179 = vshrl.u32 920167782, %v167
    %v180 = vor.u32 %v178, %v179
    %v181 = vshll.u32 920167782, %v166
    %v182 = vshrl.u32 1326507024, %v167
    %v183 = vor.u32 %v181, %v182
    %vm184 = vcmp.lt.s32.totalorder %v165, 1
    %vm185 = vcmp.lt.s32.totalorder %v165, 2
    %vm186 = vcmp.lt.s32.totalorder %v165, 3
    %vm187 = vcmp.lt.s32.totalorder %v165, 4
    %v188 = vsel %vm184, %v168, %v171
    %v189 = vsel %vm187, %v177, 2102212464
    %v190 = vsel %vm186, %v174, %v189
    %v191 = vsel %vm185, %v188, %v190
    %v192 = vsel %vm184, %v171, %v174
    %v193 = vsel %vm187, %v180, 920167782
    %v194 = vsel %vm186, %v177, %v193
    %v195 = vsel %vm185, %v192, %v194
    %v196 = vsel %vm184, %v174, %v177
    %v197 = vsel %vm187, %v183, 1326507024
    %v198 = vsel %vm186, %v180, %v197
    %v199 = vsel %vm185, %v196, %v198
    %v200 = vshll.u32 %v160, 8
    %v201 = vmul.u32.u64.compose %v200, %v199
    %v202 = vextract.low.u32 %v201
    %v203 = vextract.high.u32 %v201
    %v204 = vmul.u32.u64.compose %v200, %v195
    %v205 = vextract.low.u32 %v204
    %v206 = vextract.high.u32 %v204
    %v207 = vmul.u32 %v200, %v191
    %v208 = vadd.s32 %v203, %v205
    %vm209 = vc.u32 %v203, %v205
    %v210 = vadd.s32 %v206, 1
    %v211 = vsel %vm209, %v210, %v206
    %v212 = vadd.s32 %v207, %v211
    %v213 = vadd.s32 %v212, 536870912
    %v214 = vshrl.u32 %v213, 30
    %v215 = vshll.u32 %v214, 30
    %v216 = vsub.s32 %v212, %v215
    %vm217 = vcmp.lt.s32.totalorder %v216, 0
    %v218 = vsub.s32 0, %v216
    %v219 = vsel %vm217, %v218, %v216
    %v220 = vclz %v219
    %v221 = vsub.s32 %v220, 2
    %vm222 = vcmp.gt.s32.totalorder 0, %v221
    %v223 = vsel %vm222, 0, %v221
    %v224 = vsub.s32 32, %v223
    %v225 = vshll.u32 %v216, %v223
    %v226 = vshrl.u32 %v208, %v224
    %v227 = vor.u32 %v225, %v226
    %v228 = vsub.s32 4294967266, %v223
    %v229 = vadd.s32 %v228, 127
    %v230 = vshll.u32 %v229, 23
    %v231 = vor.u32 4788187, %v230
    %v232 = vand.u32 2147483647, %v231
    %v234 = vcvt.s32.f32 %v227
    %v235 = vmul.f32 %v234, %v232
    %v236 = vxor.u32 %v235, 2147483648
    %v237 = vsel %vm154, %v236, %v235
    %v238 = vsub.s32 4, %v214
    %v239 = vsel %vm154, %v238, %v214
    %v240 = vsel %vm153, %v48, %v237
    %v241 = vsel %vm153, 0, %v239
    %v242 = vcosq.f32.pop %v240
    %v243 = vsinq.f32.pop %v240
    %vm244 = vweird.f32 %v48
    %v245 = vadd.s32 %v241, 3
    %v246 = vand.u32 %v245, 3
    %vm247 = vcmp.lt.s32.totalorder %v246, 2
    %vm248 = vcmp.eq.s32.totalorder %v246, 0
    %v249 = vxor.u32 %v243, 2147483648
    %v250 = vsel %vm248, %v242, %v249
    %vm251 = vcmp.eq.s32.totalorder %v246, 2
    %v252 = vxor.u32 %v242, 2147483648
    %v253 = vsel %vm251, %v252, %v243
    %v254 = vsel %vm247, %v250, %v253
    %v255 = vsel %vm244, nan, %v254
    %v256 = vsel %vm43, 1, 0
    %v257 = vlaneseq
    %v258 = vshrl.u32 %v257, 7
    %v259 = vsub.s32 1, %v258
    %v260 = vrot.slane %v256, %v259
    %vm261 = vcmp.eq.s32.totalorder %v260, 1
    %v262 = vsel %vm261, %v151, %v255
    %v263 = vld [vmem:[#allocation5] sm:$0xff]
    %v264 = vadd.f32 %v263, %v262
    %265 = vst [vmem:[#allocation7] sm:$0xff] %v264
    // Predicated region
    $region18: #{tpu_custom_call.1} parent=1 // pred_check
      _
    $region19: #{tpu_custom_call.1} parent=1 // pred_check_branch
      %267 = sbr.rel (0) target = $region21
    $region20: #{tpu_custom_call.1} parent=1 // pred_region
      %s269 = ssub.s32 128, 128
      %270 = vsyncadd [#allocation4], %s269
      %s272 = sshll.u32 [#allocation7], 4
      %s273 = int_to_ptr.vmem [resolvable:$true] %s272
      %275 = dma.vmem_to_hbm [thread:$0]  %s273, 128, %s2, [#allocation4]
    $region21: #{tpu_custom_call.1} parent=1 // pred_fallthru
      _
    // Predicated region
    $region22: #{tpu_custom_call.1} parent=1 // pred_check
      _
    $region23: #{tpu_custom_call.1} parent=1 // pred_check_branch
      %277 = sbr.rel (0) target = $region25
    $region24: #{tpu_custom_call.1} parent=1 // pred_region
      %278 = dma.done [#allocation4], 128
    $region25: #{tpu_custom_call.1} parent=1 // pred_fallthru
      _
    %279 = vsyncpa [#allocation3], 1
    %280 = vsyncpa [#allocation6], 1
    %281 = vsyncpa [#allocation4], 1

// kernel: tpu_custom_call.1
$region0: #{tpu_custom_call.1}
  #allocation0 [shape = 'u32[]', space=smem, size = 0x4, offset = 0x4, fixed_abs, tag = 'smem constant byte address 0x4 - core index']
  #allocation1 [shape = 'u32[144,128]{1,0:T(1,128)}', space=vmem, size = 0x12000, scoped, tag = 'internal scratch']
  %s0 = inlined_call_operand.hbm [shape: f32[8,128], index: 0, kind: input, shape index: {}]
  %s1 = inlined_call_operand.hbm [shape: f32[64,128], index: 1, kind: input, shape index: {}]
  %s2 = inlined_call_operand.hbm [shape: f32[8,128], index: 2, kind: output, shape index: {}]
  %s3 = sld [smem:[#allocation0]]
  $region26: #{tpu_custom_call.1} parent=0
    _
  %s5 = ssub.s32 1, %s3
  %s6 = scalar_select 0, %s5, %s3
  $region1: #{tpu_custom_call.1} parent=0
    #allocation2 [shape = 'u8[4096]{0}', space=vmem, size = 0x1000, scoped, tag = 'input window, operand 0, single buffered']
    #allocation3 [shape = 's32[1]{0}', space=sflag, size = 0x4, scoped, tag = 'scoped memory for tpu_custom_call.1']
    #allocation4 [shape = 's32[1]{0}', space=sflag, size = 0x4, scoped, tag = 'scoped memory for tpu_custom_call.1']
    #allocation5 [shape = 'u8[4096]{0}', space=vmem, size = 0x1000, scoped, tag = 'input window, operand 1, single buffered']
    #allocation6 [shape = 's32[1]{0}', space=sflag, size = 0x4, scoped, tag = 'scoped memory for tpu_custom_call.1']
    #allocation7 [shape = 'u8[4096]{0}', space=vmem, size = 0x1000, scoped, tag = 'output window, operand 0, single buffered']
    %7 = vsyncpa [#allocation3], 0
    %8 = vsyncpa [#allocation6], 0
    %9 = vsyncpa [#allocation4], 0
    // Predicated region
    $region2: #{tpu_custom_call.1} parent=1 // pred_check
      _
    $region3: #{tpu_custom_call.1} parent=1 // pred_check_branch
      %11 = sbr.rel (0) target = $region5
    $region4: #{tpu_custom_call.1} parent=1 // pred_region
      %s13 = ssub.s32 128, 128
      %14 = vsyncadd [#allocation3], %s13
      %s16 = sshll.u32 [#allocation2], 4
      %s17 = int_to_ptr.vmem [resolvable:$true] %s16
      %19 = dma.hbm_to_vmem [thread:$0]  %s0, 128, %s17, [#allocation3]
    $region5: #{tpu_custom_call.1} parent=1 // pred_fallthru
      _
    // Predicated region
    $region6: #{tpu_custom_call.1} parent=1 // pred_check
      _
    $region7: #{tpu_custom_call.1} parent=1 // pred_check_branch
      %21 = sbr.rel (0) target = $region9
    $region8: #{tpu_custom_call.1} parent=1 // pred_region
      %s23 = ssub.s32 128, 128
      %24 = vsyncadd [#allocation6], %s23
      %s26 = sshll.u32 [#allocation5], 4
      %s27 = int_to_ptr.vmem [resolvable:$true] %s26
      %29 = dma.hbm_to_vmem [thread:$0]  %s1, 128, %s27, [#allocation6]
    $region9: #{tpu_custom_call.1} parent=1 // pred_fallthru
      _
    // Predicated region
    $region10: #{tpu_custom_call.1} parent=1 // pred_check
      _
    $region11: #{tpu_custom_call.1} parent=1 // pred_check_branch
      %31 = sbr.rel (0) target = $region13
    $region12: #{tpu_custom_call.1} parent=1 // pred_region
      %32 = dma.done [#allocation3], 128
    $region13: #{tpu_custom_call.1} parent=1 // pred_fallthru
      _
    // Predicated region
    $region14: #{tpu_custom_call.1} parent=1 // pred_check
      _
    $region15: #{tpu_custom_call.1} parent=1 // pred_check_branch
      %34 = sbr.rel (0) target = $region17
    $region16: #{tpu_custom_call.1} parent=1 // pred_region
      %35 = dma.done [#allocation6], 128
    $region17: #{tpu_custom_call.1} parent=1 // pred_fallthru
      _
    %v36 = vld [vmem:[#allocation2] sm:$0xff]
    %v37 = vld [vmem:[#allocation5] sm:$0xff]
    %v38 = vadd.f32 %v36, %v37
    %39 = vst [vmem:[#allocation7] sm:$0xff] %v38
    // Predicated region
    $region18: #{tpu_custom_call.1} parent=1 // pred_check
      _
    $region19: #{tpu_custom_call.1} parent=1 // pred_check_branch
      %41 = sbr.rel (0) target = $region21
    $region20: #{tpu_custom_call.1} parent=1 // pred_region
      %s43 = ssub.s32 128, 128
      %44 = vsyncadd [#allocation4], %s43
      %s46 = sshll.u32 [#allocation7], 4
      %s47 = int_to_ptr.vmem [resolvable:$true] %s46
      %49 = dma.vmem_to_hbm [thread:$0]  %s47, 128, %s2, [#allocation4]
    $region21: #{tpu_custom_call.1} parent=1 // pred_fallthru
      _
    // Predicated region
    $region22: #{tpu_custom_call.1} parent=1 // pred_check
      _
    $region23: #{tpu_custom_call.1} parent=1 // pred_check_branch
      %51 = sbr.rel (0) target = $region25
    $region24: #{tpu_custom_call.1} parent=1 // pred_region
      %52 = dma.done [#allocation4], 128
    $region25: #{tpu_custom_call.1} parent=1 // pred_fallthru
      _
    %53 = vsyncpa [#allocation3], 1
    %54 = vsyncpa [#allocation6], 1
    %55 = vsyncpa [#allocation4], 1

</llo_original>
